<compile_context>
chip_gen: v7x
topology: tpu7x:2x2x1
jax: 0.10.0
libtpu: 0.0.40
codegen_flags: <defaults>
</compile_context>

<pallas_src>
import functools

import jax
import jax.numpy as jnp
from jax import lax
from jax.experimental import pallas as pl
from jax.experimental.pallas import tpu as pltpu

# Explicit scoped-VMEM cap: above the 16/32 MiB defaults, below v7x's 64 MiB.
_VMEM_LIMIT = 48 * 1024 * 1024


def _fit(dim, target, align):
    """Largest multiple of `align` that is <= target and divides `dim`.

    Falls back through smaller aligned tiles (e.g. 256 -> 128) before giving
    up and using the full dimension, so odd sizes don't force a huge tile.
    """
    t = min(target, dim)
    t -= t % align
    while t >= align:
        if dim % t == 0:
            return t
        t -= align
    return dim


def _exp_dtype_for_device():
    """bf16 exp on chips with a bf16 EUP (v6e / v7x); f32 on v5e and older."""
    try:
        kind = jax.devices()[0].device_kind.lower()
    except Exception:
        return jnp.float32
    return jnp.bfloat16 if ("v6" in kind or "v7" in kind) else jnp.float32


# ----------------------------------------------------------------------------
# Tiled linear:  out = x @ W (+ b), bf16 MXU operands, f32 accumulation.
# ----------------------------------------------------------------------------
def _linear_kernel(x_ref, w_ref, b_ref, o_ref, acc_ref):
    @pl.when(pl.program_id(2) == 0)
    def _():
        acc_ref[...] = jnp.zeros_like(acc_ref)

    acc_ref[...] += jnp.dot(x_ref[...], w_ref[...],
                            preferred_element_type=jnp.float32)

    @pl.when(pl.program_id(2) == pl.num_programs(2) - 1)
    def _():
        o_ref[...] = (acc_ref[...] + b_ref[...]).astype(o_ref.dtype)


def _linear(x, w, b, out_dtype, *, tm=256, tn=256, tk=512):
    # x: (M, K) bf16, w: (K, N) bf16, b: (1, N) f32  ->  (M, N) out_dtype
    M, K = x.shape
    N = w.shape[1]
    tm, tn, tk = _fit(M, tm, 8), _fit(N, tn, 128), _fit(K, tk, 128)
    return pl.pallas_call(
        _linear_kernel,
        out_shape=jax.ShapeDtypeStruct((M, N), out_dtype),
        grid=(M // tm, N // tn, K // tk),
        in_specs=[
            pl.BlockSpec((tm, tk), lambda i, j, k: (i, k)),
            pl.BlockSpec((tk, tn), lambda i, j, k: (k, j)),
            pl.BlockSpec((1, tn), lambda i, j, k: (0, j)),
        ],
        out_specs=pl.BlockSpec((tm, tn), lambda i, j, k: (i, j)),
        scratch_shapes=[pltpu.VMEM((tm, tn), jnp.float32)],
        compiler_params=pltpu.CompilerParams(
            dimension_semantics=("parallel", "parallel", "arbitrary"),
            vmem_limit_bytes=_VMEM_LIMIT),
    )(x, w, b)


# ----------------------------------------------------------------------------
# Flash-style causal attention, GQA group fused, q-tiled, in-kernel NeoX rope.
# grid = (num_q_tiles, num_kv_heads, num_kv_tiles); online softmax over KV.
# ----------------------------------------------------------------------------
def _attn_kernel(q_ref, k_ref, v_ref, cosq_ref, sinq_ref, cosk_ref, sink_ref,
                 o_ref, qr_ref, m_ref, l_ref, acc_ref,
                 *, scaling, tq, tkv, exp_dtype):
    qt = pl.program_id(0)
    kt = pl.program_id(2)
    group = q_ref.shape[1]
    D = q_ref.shape[3]
    half = D // 2
    rows = group * tq

    @pl.when(kt == 0)
    def _():
        # NeoX rope on the whole query-group tile, once per (q tile, kv head).
        # rotate_half sign is pre-folded into the sin cache; the softmax scale
        # is folded into q before the bf16 cast.
        q = q_ref[0].astype(jnp.float32)                        # (group, tq, D)
        cos = cosq_ref[...].astype(jnp.float32)                 # (tq, D)
        sin = sinq_ref[...].astype(jnp.float32)
        qr = q * cos[None] + pltpu.roll(q, half, 2) * sin[None]
        qr_ref[...] = (qr * scaling).reshape(rows, D).astype(jnp.bfloat16)
        m_ref[...] = jnp.full(m_ref.shape, -jnp.inf, dtype=m_ref.dtype)
        l_ref[...] = jnp.zeros(l_ref.shape, dtype=l_ref.dtype)
        acc_ref[...] = jnp.zeros(acc_ref.shape, dtype=acc_ref.dtype)

    # Causal skip: this kv tile only contributes if its first key position is
    # <= the last query position of this q tile.
    @pl.when(kt * tkv < (qt + 1) * tq)
    def _():
        # rope this K tile (once per kv head, shared by the whole query group).
        k = k_ref[0].astype(jnp.float32)                        # (tkv, D)
        kr = (k * cosk_ref[...].astype(jnp.float32)
              + pltpu.roll(k, half, 1) * sink_ref[...].astype(jnp.float32)
              ).astype(jnp.bfloat16)

        # scores (group*tq, tkv): contract over D on the MXU, f32 accumulation.
        s = lax.dot_general(qr_ref[...], kr, (((1,), (1,)), ((), ())),
                            preferred_element_type=jnp.float32)

        # causal mask built in-kernel from tile offsets (no (GS,1) qpos DMA).
        qpos = qt * tq + lax.broadcasted_iota(jnp.int32, s.shape, 0) % tq
        kpos = kt * tkv + lax.broadcasted_iota(jnp.int32, s.shape, 1)
        s = jnp.where(kpos <= qpos, s, -jnp.inf)

        m_prev = m_ref[...]
        m_new = jnp.maximum(m_prev, jnp.max(s, axis=-1, keepdims=True))
        alpha = jnp.exp(m_prev - m_new)
        # bf16 exp on v6e/v7x (EUP-bound regime for D<=128), f32 on v5e.
        p = jnp.exp((s - m_new).astype(exp_dtype))
        l_ref[...] = alpha * l_ref[...] + jnp.sum(
            p, axis=-1, keepdims=True, dtype=jnp.float32)
        acc_ref[...] = alpha * acc_ref[...] + jnp.dot(
            p.astype(jnp.bfloat16), v_ref[0],
            preferred_element_type=jnp.float32)
        m_ref[...] = m_new

    @pl.when(kt == pl.num_programs(2) - 1)
    def _():
        out = acc_ref[...] * pl.reciprocal(l_ref[...], approx=True)
        o_ref[0] = out.reshape(group, tq, D).astype(o_ref.dtype)


def _attention(q, k, v, cos, sin, scaling, *, tq_target=256, tkv_target=512):
    # q: (Hkv, group, S, D) bf16; k, v: (Hkv, S, D) bf16; cos/sin: (S, D) bf16.
    Hkv, group, S, D = q.shape
    tq = _fit(S, tq_target, 8)
    tkv = _fit(S, tkv_target, 128)
    exp_dtype = _exp_dtype_for_device()

    def _kv_index(qt, kt):
        # Clamp to the last kv tile this q tile actually needs, so DMAs for
        # fully-masked (skipped) kv tiles are not re-issued.
        last = ((qt + 1) * tq - 1) // tkv
        return jnp.minimum(kt, last)

    kernel = functools.partial(_attn_kernel, scaling=scaling, tq=tq, tkv=tkv,
                               exp_dtype=exp_dtype)
    return pl.pallas_call(
        kernel,
        out_shape=jax.ShapeDtypeStruct((Hkv, group, S, D), jnp.bfloat16),
        grid=(S // tq, Hkv, S // tkv),
        in_specs=[
            pl.BlockSpec((1, group, tq, D), lambda qt, g, kt: (g, 0, qt, 0)),
            pl.BlockSpec((1, tkv, D),
                         lambda qt, g, kt: (g, _kv_index(qt, kt), 0)),
            pl.BlockSpec((1, tkv, D),
                         lambda qt, g, kt: (g, _kv_index(qt, kt), 0)),
            pl.BlockSpec((tq, D), lambda qt, g, kt: (qt, 0)),     # cos for q
            pl.BlockSpec((tq, D), lambda qt, g, kt: (qt, 0)),     # sin for q
            pl.BlockSpec((tkv, D),
                         lambda qt, g, kt: (_kv_index(qt, kt), 0)),  # cos for k
            pl.BlockSpec((tkv, D),
                         lambda qt, g, kt: (_kv_index(qt, kt), 0)),  # sin for k
        ],
        out_specs=pl.BlockSpec((1, group, tq, D),
                               lambda qt, g, kt: (g, 0, qt, 0)),
        scratch_shapes=[
            pltpu.VMEM((group * tq, D), jnp.bfloat16),   # rope'd + scaled q
            pltpu.VMEM((group * tq, 1), jnp.float32),    # running max
            pltpu.VMEM((group * tq, 1), jnp.float32),    # running denominator
            pltpu.VMEM((group * tq, D), jnp.float32),    # output accumulator
        ],
        compiler_params=pltpu.CompilerParams(
            dimension_semantics=("parallel", "parallel", "arbitrary"),
            vmem_limit_bytes=_VMEM_LIMIT),
    )(q, k, v, cos, sin, cos, sin)


# ----------------------------------------------------------------------------
# Module wrapper
# ----------------------------------------------------------------------------
class TinyllmAttentionPallas:
    def __init__(self, hidden_size, num_heads, num_kv_heads,
                 max_position=1024, rope_theta=10000.0, key=None):
        self.hidden_size = hidden_size
        self.num_heads = num_heads
        self.num_kv_heads = num_kv_heads
        self.head_dim = hidden_size // num_heads
        self.q_size = self.num_heads * self.head_dim
        self.kv_size = self.num_kv_heads * self.head_dim
        self.scaling = self.head_dim ** -0.5
        self.rope_theta = rope_theta
        self.max_position = max_position

        key = jax.random.PRNGKey(42) if key is None else key
        k1, k2, k3 = jax.random.split(key, 3)
        qkv_out = self.q_size + 2 * self.kv_size
        # Stored transposed relative to torch (forward is x @ W); bf16 for MXU.
        self.w_qkv = (jax.random.normal(k1, (hidden_size, qkv_out),
                                        jnp.float32) * 0.05).astype(jnp.bfloat16)
        self.b_qkv = jax.random.normal(k2, (1, qkv_out), jnp.float32) * 0.05
        self.w_o = (jax.random.normal(k3, (self.q_size, hidden_size),
                                      jnp.float32) * 0.05).astype(jnp.bfloat16)
        self.b_o = jnp.zeros((1, hidden_size), jnp.float32)  # o_proj bias=False

        # NeoX rope caches (bf16 to halve DMA bytes). The rotate_half sign
        # ([-1]*half ++ [+1]*half) is folded into the sin cache so the kernel
        # computes x*cos + roll(x, half)*sin.
        half = self.head_dim // 2
        inv_freq = 1.0 / (rope_theta **
                          (jnp.arange(0, half, dtype=jnp.float32) / half))
        t = jnp.arange(max_position, dtype=jnp.float32)
        freqs = t[:, None] * inv_freq[None, :]                        # (P, D/2)
        self.cos_cache = jnp.concatenate(
            [jnp.cos(freqs)] * 2, -1).astype(jnp.bfloat16)            # (P, D)
        self.sin_cache = jnp.concatenate(
            [-jnp.sin(freqs), jnp.sin(freqs)], -1).astype(jnp.bfloat16)

    def __call__(self, positions, hidden_states):
        # positions: (S,) int32, hidden_states: (S, hidden) f32
        # TODO(synk): kv_cache / AttentionMetadata paged-decode path is not
        # implemented; this is the single-sequence prefill path, and the
        # causal mask assumes query positions 0..S-1 (matches the reference;
        # chunked prefill with nonzero offsets would need qpos from positions).
        S = hidden_states.shape[0]
        D = self.head_dim
        Hq, Hkv = self.num_heads, self.num_kv_heads
        group = Hq // Hkv

        x = hidden_states.astype(jnp.bfloat16)            # cast once, not per tile
        qkv = _linear(x, self.w_qkv, self.b_qkv, jnp.bfloat16)   # (S, q+2kv) bf16

        # Single head-major transpose of the fused qkv (bf16) instead of three.
        # TODO(synk): when head_dim is a multiple of 128 this transpose (and the
        # post-attention one) can be removed by column-slicing qkv / writing the
        # attention output directly in (S, Hq*D) layout via the index_maps; the
        # tiny test head_dim here violates the (8,128) block constraint for that.
        qkv_h = qkv.reshape(S, Hq + 2 * Hkv, D).transpose(1, 0, 2)
        q = qkv_h[:Hq].reshape(Hkv, group, S, D)          # group-fused queries
        k = qkv_h[Hq:Hq + Hkv]                            # (Hkv, S, D)
        v = qkv_h[Hq + Hkv:]                              # (Hkv, S, D)

        cos = self.cos_cache[positions]                   # (S, D) bf16
        sin = self.sin_cache[positions]                   # (S, D) bf16, sign folded

        attn = _attention(q, k, v, cos, sin, self.scaling)      # (Hkv,group,S,D)
        attn = attn.reshape(Hq, S, D).transpose(1, 0, 2).reshape(S, self.q_size)

        return _linear(attn, self.w_o, self.b_o, jnp.float32)


# ----------------------------------------------------------------------------
# Pure-JAX reference (for correctness check)
# ----------------------------------------------------------------------------
def _reference(mod, positions, hidden_states):
    S = hidden_states.shape[0]
    D = mod.head_dim
    w_qkv = mod.w_qkv.astype(jnp.float32)
    w_o = mod.w_o.astype(jnp.float32)
    qkv = hidden_states @ w_qkv + mod.b_qkv
    q = qkv[:, :mod.q_size].reshape(S, mod.num_heads, D)
    k = qkv[:, mod.q_size:mod.q_size + mod.kv_size].reshape(
        S, mod.num_kv_heads, D)
    v = qkv[:, mod.q_size + mod.kv_size:].reshape(S, mod.num_kv_heads, D)

    cos = mod.cos_cache[positions].astype(jnp.float32)[:, None, :]
    sin = mod.sin_cache[positions].astype(jnp.float32)[:, None, :]

    def rope(x):
        return x * cos + jnp.roll(x, D // 2, axis=-1) * sin

    q, k = rope(q), rope(k)
    group = mod.num_heads // mod.num_kv_heads
    k = jnp.repeat(k, group, axis=1)
    v = jnp.repeat(v, group, axis=1)
    s = jnp.einsum("qhd,khd->hqk", q, k) * mod.scaling
    mask = jnp.tril(jnp.ones((S, S), bool))
    s = jnp.where(mask[None], s, -jnp.inf)
    p = jax.nn.softmax(s, axis=-1)
    o = jnp.einsum("hqk,khd->qhd", p, v).reshape(S, mod.q_size)
    return o @ w_o


if __name__ == "__main__":
    hidden_size = 32
    num_heads = 4
    num_kv_heads = 2
    seq = 8

    mod = TinyllmAttentionPallas(hidden_size, num_heads, num_kv_heads,
                                 max_position=1024, rope_theta=10000.0)

    key = jax.random.PRNGKey(0)
    hidden_states = jax.random.normal(key, (seq, hidden_size), jnp.float32)
    positions = jnp.arange(seq, dtype=jnp.int32)

    out = jax.block_until_ready(mod(positions, hidden_states))

    ref = _reference(mod, positions, hidden_states)
    assert out.shape == (seq, hidden_size)
    max_err = float(jnp.max(jnp.abs(out - ref)))
    assert jnp.allclose(out, ref, atol=2e-2, rtol=2e-2), max_err

    print("KERNEL_OK")
</pallas_src>

<mosaic_0001>
module attributes {stable_mosaic.version = 11 : i64} {
  func.func @_linear_kernel(%arg0: i32, %arg1: i32, %arg2: i32, %arg3: memref<8x32xbf16, #tpu.memory_space<vmem>>, %arg4: memref<32x64xbf16, #tpu.memory_space<vmem>>, %arg5: memref<1x64xf32, #tpu.memory_space<vmem>>, %arg6: memref<8x64xbf16, #tpu.memory_space<vmem>>, %arg7: memref<8x64xf32, #tpu.memory_space<vmem>>) attributes {dimension_semantics = [#tpu.dimension_semantics<parallel>, #tpu.dimension_semantics<parallel>, #tpu.dimension_semantics<arbitrary>], iteration_bounds = array<i64: 1, 1, 1>, scalar_prefetch = 0 : i64, scratch_operands = 1 : i64, tpu.core_type = #tpu.core_type<tc>, window_params = [{transform_indices = @transform_0, window_bounds = array<i64: 8, 32>}, {transform_indices = @transform_1, window_bounds = array<i64: 32, 64>}, {transform_indices = @transform_2, window_bounds = array<i64: 1, 64>}, {transform_indices = @transform_3, window_bounds = array<i64: 8, 64>}]} {
    %c0_i32 = arith.constant 0 : i32
    %0 = arith.cmpi eq, %arg2, %c0_i32 : i32
    %1 = arith.extui %0 : i1 to i32
    %c0_i32_0 = arith.constant 0 : i32
    %2 = arith.cmpi ne, %1, %c0_i32_0 : i32
    scf.if %2 {
      %cst_10 = arith.constant 0.000000e+00 : f32
      %12 = vector.broadcast %cst_10 : f32 to vector<8x64xf32>
      %c0_11 = arith.constant 0 : index
      %c0_12 = arith.constant 0 : index
      %13 = vector.load %arg7[%c0_11, %c0_12] : memref<8x64xf32, #tpu.memory_space<vmem>>, vector<8x64xf32>
      tpu.vector_store %arg7[%c0_11, %c0_12], %12 {strides = array<i32>} : memref<8x64xf32, #tpu.memory_space<vmem>>, vector<8x64xf32>,
    } else {
    }
    %c0 = arith.constant 0 : index
    %c0_1 = arith.constant 0 : index
    %3 = vector.load %arg7[%c0, %c0_1] : memref<8x64xf32, #tpu.memory_space<vmem>>, vector<8x64xf32>
    %c0_2 = arith.constant 0 : index
    %c0_3 = arith.constant 0 : index
    %4 = vector.load %arg3[%c0_2, %c0_3] : memref<8x32xbf16, #tpu.memory_space<vmem>>, vector<8x32xbf16>
    %c0_4 = arith.constant 0 : index
    %c0_5 = arith.constant 0 : index
    %5 = vector.load %arg4[%c0_4, %c0_5] : memref<32x64xbf16, #tpu.memory_space<vmem>>, vector<32x64xbf16>
    %cst = arith.constant dense<0.000000e+00> : vector<8x64xf32>
    %6 = tpu.matmul %4, %5, %cst {dimension_numbers = #tpu.dot_dimension_numbers<[1], [0], [0], [1], [0, 0, 1, 1], [], []>} : vector<8x32xbf16>, vector<32x64xbf16>, vector<8x64xf32> -> vector<8x64xf32>
    %7 = arith.addf %3, %6 : vector<8x64xf32>
    %c0_6 = arith.constant 0 : index
    %c0_7 = arith.constant 0 : index
    %8 = vector.load %arg7[%c0_6, %c0_7] : memref<8x64xf32, #tpu.memory_space<vmem>>, vector<8x64xf32>
    tpu.vector_store %arg7[%c0_6, %c0_7], %7 {strides = array<i32>} : memref<8x64xf32, #tpu.memory_space<vmem>>, vector<8x64xf32>,
    %c0_i32_8 = arith.constant 0 : i32
    %9 = arith.cmpi eq, %arg2, %c0_i32_8 : i32
    %10 = arith.extui %9 : i1 to i32
    %c0_i32_9 = arith.constant 0 : i32
    %11 = arith.cmpi ne, %10, %c0_i32_9 : i32
    scf.if %11 {
      %c0_10 = arith.constant 0 : index
      %c0_11 = arith.constant 0 : index
      %12 = vector.load %arg7[%c0_10, %c0_11] : memref<8x64xf32, #tpu.memory_space<vmem>>, vector<8x64xf32>
      %c0_12 = arith.constant 0 : index
      %c0_13 = arith.constant 0 : index
      %13 = vector.load %arg5[%c0_12, %c0_13] : memref<1x64xf32, #tpu.memory_space<vmem>>, vector<1x64xf32>
      %14 = vector.broadcast %13 : vector<1x64xf32> to vector<8x64xf32>
      %15 = arith.addf %12, %14 : vector<8x64xf32>
      %16 = arith.truncf %15 : vector<8x64xf32> to vector<8x64xbf16>
      %c0_14 = arith.constant 0 : index
      %c0_15 = arith.constant 0 : index
      %17 = vector.load %arg6[%c0_14, %c0_15] : memref<8x64xbf16, #tpu.memory_space<vmem>>, vector<8x64xbf16>
      tpu.vector_store %arg6[%c0_14, %c0_15], %16 {strides = array<i32>} : memref<8x64xbf16, #tpu.memory_space<vmem>>, vector<8x64xbf16>,
    } else {
    }
    return
  }
  func.func @transform_0(%arg0: i32, %arg1: i32, %arg2: i32) -> (i32, i32) {
    %c0_i32 = arith.constant 0 : i32
    return %arg0, %arg2 : i32, i32
  }
  func.func @transform_1(%arg0: i32, %arg1: i32, %arg2: i32) -> (i32, i32) {
    %c0_i32 = arith.constant 0 : i32
    return %arg2, %arg1 : i32, i32
  }
  func.func @transform_2(%arg0: i32, %arg1: i32, %arg2: i32) -> (i32, i32) {
    %c0_i32 = arith.constant 0 : i32
    %c0_i32_0 = arith.constant 0 : i32
    return %c0_i32, %arg1 : i32, i32
  }
  func.func @transform_3(%arg0: i32, %arg1: i32, %arg2: i32) -> (i32, i32) {
    %c0_i32 = arith.constant 0 : i32
    return %arg0, %arg1 : i32, i32
  }
}

</mosaic_0001>

<llo_original>
// kernel: tpu_custom_call.1
$region0: #{tpu_custom_call.1}
  #allocation0 [shape = 'u32[]', space=smem, size = 0x4, offset = 0x4, fixed_abs, tag = 'smem constant byte address 0x4 - core index']
  #allocation1 [shape = 'u32[144,128]{1,0:T(1,128)}', space=vmem, size = 0x12000, scoped, tag = 'internal scratch']
  #allocation2 [shape = 'f32[8,64]{1,0:T(8,128)}', space=vmem, size = 0x1000, scoped, tag = 'scratch operand']
  %s0 = inlined_call_operand.hbm [shape: bf16[8,32], index: 0, kind: input, shape index: {}]
  %s1 = inlined_call_operand.hbm [shape: bf16[32,64], index: 1, kind: input, shape index: {}]
  %s2 = inlined_call_operand.vmem [shape: f32[1,64], index: 2, kind: input, shape index: {}]
  %s3 = inlined_call_operand.hbm [shape: bf16[8,64], index: 3, kind: output, shape index: {}]
  %s4 = sld [smem:[#allocation0]]
  $region38: #{tpu_custom_call.1} parent=0
    _
  %s6 = ssub.s32 1, %s4
  %s7 = scalar_select 0, %s6, %s4
  $region1: #{tpu_custom_call.1} parent=0
    #allocation3 [shape = 'u8[2048]{0}', space=vmem, size = 0x800, scoped, tag = 'input window, operand 0, single buffered']
    #allocation4 [shape = 's32[1]{0}', space=sflag, size = 0x4, scoped, tag = 'scoped memory for tpu_custom_call.1']
    #allocation5 [shape = 's32[1]{0}', space=sflag, size = 0x4, scoped, tag = 'scoped memory for tpu_custom_call.1']
    #allocation6 [shape = 'u8[8192]{0}', space=vmem, size = 0x2000, scoped, tag = 'input window, operand 1, single buffered']
    #allocation7 [shape = 's32[1]{0}', space=sflag, size = 0x4, scoped, tag = 'scoped memory for tpu_custom_call.1']
    #allocation8 [shape = 'u8[2048]{0}', space=vmem, size = 0x800, scoped, tag = 'output window, operand 0, single buffered']
    %8 = vsyncpa [#allocation4], 0
    %9 = vsyncpa [#allocation7], 0
    %10 = vsyncpa [#allocation5], 0
    // Predicated region
    $region2: #{tpu_custom_call.1} parent=1 // pred_check
      _
    $region3: #{tpu_custom_call.1} parent=1 // pred_check_branch
      %12 = sbr.rel (0) target = $region5
    $region4: #{tpu_custom_call.1} parent=1 // pred_region
      %s14 = ssub.s32 64, 64
      %15 = vsyncadd [#allocation4], %s14
      %s17 = sshll.u32 [#allocation3], 4
      %s18 = int_to_ptr.vmem [resolvable:$true] %s17
      %20 = dma.hbm_to_vmem [thread:$0]  %s0, 64, %s18, [#allocation4]
    $region5: #{tpu_custom_call.1} parent=1 // pred_fallthru
      _
    // Predicated region
    $region6: #{tpu_custom_call.1} parent=1 // pred_check
      _
    $region7: #{tpu_custom_call.1} parent=1 // pred_check_branch
      %22 = sbr.rel (0) target = $region9
    $region8: #{tpu_custom_call.1} parent=1 // pred_region
      %s24 = ssub.s32 256, 256
      %25 = vsyncadd [#allocation7], %s24
      %s26 = sshll.u32 [#allocation6], 4
      %s27 = int_to_ptr.vmem [resolvable:$true] %s26
      %32 = dma.hbm_to_vmem [thread:$0]  %s1, 256, %s27, [#allocation7], 64, 64, 4
    $region9: #{tpu_custom_call.1} parent=1 // pred_fallthru
      _
    // Predicated region
    $region10: #{tpu_custom_call.1} parent=1 // pred_check
      _
    $region11: #{tpu_custom_call.1} parent=1 // pred_check_branch
      %34 = sbr.rel (0) target = $region13
    $region12: #{tpu_custom_call.1} parent=1 // pred_region
      _
    $region13: #{tpu_custom_call.1} parent=1 // pred_fallthru
      _
    // Predicated region
    $region14: #{tpu_custom_call.1} parent=1 // pred_check
      _
    $region15: #{tpu_custom_call.1} parent=1 // pred_check_branch
      %36 = sbr.rel (0) target = $region17
    $region16: #{tpu_custom_call.1} parent=1 // pred_region
      %37 = dma.done [#allocation4], 64
    $region17: #{tpu_custom_call.1} parent=1 // pred_fallthru
      _
    // Predicated region
    $region18: #{tpu_custom_call.1} parent=1 // pred_check
      _
    $region19: #{tpu_custom_call.1} parent=1 // pred_check_branch
      %39 = sbr.rel (0) target = $region21
    $region20: #{tpu_custom_call.1} parent=1 // pred_region
      %40 = dma.done [#allocation7], 256
    $region21: #{tpu_custom_call.1} parent=1 // pred_fallthru
      _
    %p42 = scmp.eq.s32.totalorder 0, 0
    // Predicated region
    $region22: #{tpu_custom_call.1} parent=1 // pred_check
      %p43 = pneg %p42
    $region23: #{tpu_custom_call.1} parent=1 // pred_check_branch
      %45 = sbr.rel (%p43) target = $region25
    $region24: #{tpu_custom_call.1} parent=1 // pred_region
      %vm46 = vcmask 523264
      %47 = vst.msk [vmem:[#allocation2] sm:$0xff] %vm46, 0.0
    $region25: #{tpu_custom_call.1} parent=1 // pred_fallthru
      _
    %v48 = vld [vmem:[#allocation2] sm:$0xff]
    %v49 = vld [vmem:[#allocation3] sm:$0xf]
    %v50 = vld [vmem:[#allocation6] sm:$0xf]
    %v51 = vld [vmem:[#allocation6 + $0x4] sm:$0xf]
    %v52 = vld [vmem:[#allocation6 + $0x8] sm:$0xf]
    %v53 = vld [vmem:[#allocation6 + $0xc] sm:$0xf]
    %v58 = vunpack.c.l.b16 %v50
    %v59 = vunpack.c.l.b16 %v51
    %v60 = vunpack.c.l.b16 %v52
    %v61 = vunpack.c.l.b16 %v53
    %v62 = vpack.c.b16 %v59, %v58
    %v63 = vpack.c.b16 %v61, %v60
    %vm66 = vcmask 261120
    %v68 = vsel %vm66, %v49, 0
    %70 = vmatprep.subr.bf16.mxu0 0
    %71 = vmatpush1.bf16.msra.mxu0 %v62
    %72 = vmatprep.subr.bf16.mxu0 0
    %73 = vmatpush1.bf16.msra.mxu0 %v63
    %74 = vmatprep.subr.bf16.mxu0 0
    %75 = vmatpush1.bf16.msra.mxu0 0
    %76 = vmatprep.subr.bf16.mxu0 0
    %77 = vmatpush1.bf16.msra.mxu0 0
    %78 = vmatprep.subr.bf16.mxu0 0
    %79 = vmatpush1.bf16.msra.mxu0 0
    %80 = vmatprep.subr.bf16.mxu0 0
    %81 = vmatpush1.bf16.msra.mxu0 0
    %82 = vmatprep.subr.bf16.mxu0 0
    %83 = vmatpush1.bf16.msra.mxu0 0
    %84 = vmatprep.subr.bf16.mxu0 0
    %85 = vmatpush1.bf16.msra.mxu0 0
    %86 = vmatprep.subr.bf16.mxu0 0
    %87 = vmatpush1.bf16.msra.mxu0 0
    %88 = vmatprep.subr.bf16.mxu0 0
    %89 = vmatpush1.bf16.msra.mxu0 0
    %90 = vmatprep.subr.bf16.mxu0 0
    %91 = vmatpush1.bf16.msra.mxu0 0
    %92 = vmatprep.subr.bf16.mxu0 0
    %93 = vmatpush1.bf16.msra.mxu0 0
    %94 = vmatprep.subr.bf16.mxu0 0
    %95 = vmatpush1.bf16.msra.mxu0 0
    %96 = vmatprep.subr.bf16.mxu0 0
    %97 = vmatpush1.bf16.msra.mxu0 0
    %98 = vmatprep.subr.bf16.mxu0 0
    %99 = vmatpush1.bf16.msra.mxu0 0
    %100 = vmatprep.subr.bf16.mxu0 0
    %101 = vmatpush1.bf16.msra.mxu0 0
    %102 = vmatprep.mubr.bf16.mxu0 0
    %103 = vmatmul.mubr.bf16.gmra.mrb[0].mxu0 %v68
    %v104 = vpop.f32.mrb[0].mxu0
    %v105 = vadd.f32 0.0, %v104
    %v106 = vpop.f32.mrb[0].mxu0
    %v107 = vpop.f32.mrb[0].mxu0
    %v108 = vpop.f32.mrb[0].mxu0
    %109 = vdwg.mxu0
    %v110 = vadd.f32 %v48, %v105
    %vm111 = vcmask 523264
    %112 = vst.msk [vmem:[#allocation2] sm:$0xff] %vm111, %v110
    // Predicated region
    $region26: #{tpu_custom_call.1} parent=1 // pred_check
      %p113 = pneg %p42
    $region27: #{tpu_custom_call.1} parent=1 // pred_check_branch
      %115 = sbr.rel (%p113) target = $region29
    $region28: #{tpu_custom_call.1} parent=1 // pred_region
      %v116 = vld [vmem:[#allocation2] sm:$0xff]
      %v117 = vld [vmem:[%s2] sm:$0x1]
      %v119 = vlaneseq
      %v120 = vshrl.u32 %v119, 7
      %v121 = vsub.s32 0, %v120
      %v122 = vrot.slane %v117, %v121
      %v124 = vadd.f32 %v116, %v122
      %v125 = vpack.c.bf16 %v124, %v124
      %vm126 = vcmask 519168
      %127 = vst.msk [vmem:[#allocation8] sm:$0xf] %vm126, %v125
    $region29: #{tpu_custom_call.1} parent=1 // pred_fallthru
      _
    // Predicated region
    $region30: #{tpu_custom_call.1} parent=1 // pred_check
      _
    $region31: #{tpu_custom_call.1} parent=1 // pred_check_branch
      %129 = sbr.rel (0) target = $region33
    $region32: #{tpu_custom_call.1} parent=1 // pred_region
      %s131 = ssub.s32 64, 64
      %132 = vsyncadd [#allocation5], %s131
      %s134 = sshll.u32 [#allocation8], 4
      %s135 = int_to_ptr.vmem [resolvable:$true] %s134
      %137 = dma.vmem_to_hbm [thread:$0]  %s135, 64, %s3, [#allocation5]
    $region33: #{tpu_custom_call.1} parent=1 // pred_fallthru
      _
    // Predicated region
    $region34: #{tpu_custom_call.1} parent=1 // pred_check
      _
    $region35: #{tpu_custom_call.1} parent=1 // pred_check_branch
      %139 = sbr.rel (0) target = $region37
    $region36: #{tpu_custom_call.1} parent=1 // pred_region
      %140 = dma.done [#allocation5], 64
    $region37: #{tpu_custom_call.1} parent=1 // pred_fallthru
      _
    %141 = vsyncpa [#allocation4], 1
    %142 = vsyncpa [#allocation7], 1
    %143 = vsyncpa [#allocation5], 1

</llo_original>
